<compile_context>
chip_gen: v5e
topology: v5e:2x2
jax: 0.10.0
libtpu: 0.0.40
codegen_flags: <defaults>
</compile_context>

<pallas_src>
import jax
import jax.numpy as jnp
from jax import lax
from jax.experimental import pallas as pl
from jax.experimental.pallas import tpu as pltpu

UNIT = 265  # hardcoded channel index, as in the PyTorch module


def _apply_masked_style_kernel(style_ref, fmap_ref, mask_ref, frac_ref, out_ref):
    # style_ref: (1, C, 1)      per-batch style column (constant over HW tiles)
    # fmap_ref : (1, C, T)      per-(batch, hw-tile) feature-map block, native dtype
    # mask_ref : (1, T)         spatial mask tile, shared across batch/channels
    # frac_ref : (1,) f32       runtime scalar in SMEM
    # out_ref  : (1, C, T)      native dtype
    style = style_ref[0].astype(jnp.float32)          # (C, 1)
    fmap = fmap_ref[0]                                 # (C, T) native dtype
    mask = mask_ref[...].astype(jnp.float32)           # (1, T)
    frac = frac_ref[0]                                 # scalar f32

    c = style.shape[0]
    ch_idx = lax.broadcasted_iota(jnp.int32, (c, 1), 0)
    light_val = frac * 20.0
    # Delta is nonzero only at channel UNIT:  light - no_light
    delta = jnp.where(ch_idx == UNIT, light_val - style, 0.0)   # (C, 1)

    # modulation = no_light + (light - no_light) * mask
    modulation = style + delta * mask                            # (C, T) f32
    out_ref[0] = (modulation * fmap.astype(jnp.float32)).astype(out_ref.dtype)


def _choose_tile_hw(hw_pad, c, itemsize, requested=None):
    """Pick a lane-dense HW tile (multiple of 128 dividing hw_pad, ~2 MiB/block)."""
    if requested is not None:
        tile = int(requested)
    else:
        target_bytes = 2 * 1024 * 1024                  # per fmap block
        tile = max(128, min(4096, target_bytes // max(1, c * itemsize)))
        tile = (tile // 128) * 128
    tile = min(tile, hw_pad)
    while hw_pad % tile != 0:                           # hw_pad is a multiple of 128
        tile -= 128
    return max(tile, 128)


def apply_masked_style(fmap, style, mask, frac, *, tile_hw=None):
    """fmap: [B, C, H, W] (NCHW), style: [B, C], mask: [H, W], frac: scalar.

    Returns (new_fmap, style), mirroring DataBag(fmap=..., style=d.style).
    """
    B, C, H, W = fmap.shape
    HW = H * W
    hw_pad = ((HW + 127) // 128) * 128                  # lane-dense output stores
    dtype = fmap.dtype

    fmap2 = fmap.reshape(B, C, HW)
    mask2 = mask.reshape(1, HW)
    if hw_pad != HW:
        fmap2 = jnp.pad(fmap2, ((0, 0), (0, 0), (0, hw_pad - HW)))
        mask2 = jnp.pad(mask2, ((0, 0), (0, hw_pad - HW)))
    style3 = style.reshape(B, C, 1)
    frac_arr = jnp.asarray(frac, dtype=jnp.float32).reshape(1)

    tile = _choose_tile_hw(hw_pad, C, jnp.dtype(dtype).itemsize, tile_hw)
    grid = (B, hw_pad // tile)

    out = pl.pallas_call(
        _apply_masked_style_kernel,
        out_shape=jax.ShapeDtypeStruct((B, C, hw_pad), dtype),
        grid_spec=pltpu.PrefetchScalarGridSpec(
            num_scalar_prefetch=0,
            grid=grid,
            in_specs=[
                # style: constant over the HW-tile axis -> fetched once per batch
                pl.BlockSpec((1, C, 1), lambda b, s: (b, 0, 0)),
                # fmap: (batch, hw-tile) blocks
                pl.BlockSpec((1, C, tile), lambda b, s: (b, 0, s)),
                # mask: shared across batch, tiled over HW
                pl.BlockSpec((1, tile), lambda b, s: (0, s)),
                # frac: runtime scalar in SMEM (no recompile per value)
                pl.BlockSpec(memory_space=pltpu.MemorySpace.SMEM),
            ],
            out_specs=pl.BlockSpec((1, C, tile), lambda b, s: (b, 0, s)),
        ),
        # fmap (input index 1) has identical shape/dtype to the output -> alias.
        input_output_aliases={1: 0},
        compiler_params=pltpu.CompilerParams(
            dimension_semantics=("parallel", "parallel"),
            vmem_limit_bytes=32 * 1024 * 1024,
        ),
    )(style3, fmap2, mask2, frac_arr)

    if hw_pad != HW:
        out = out[:, :, :HW]
    new_fmap = out.reshape(B, C, H, W)
    # TODO(synk): DataBag container semantics are just a pass-through of `style`.
    return new_fmap, style


def _reference(fmap, style, mask, frac):
    # Pure-JAX reference of the PyTorch forward (f32 math).
    light = style.at[:, UNIT].set(frac * 20.0)
    mod = light[:, :, None, None] * mask + style[:, :, None, None] * (1.0 - mask)
    return mod * fmap


if __name__ == "__main__":
    key = jax.random.PRNGKey(0)
    frac = 0.7

    # ---- Case 1: f32, HW multiple of 128, forced multi-tile grid --------------
    B, C, H, W = 2, 512, 16, 16          # C must exceed UNIT=265
    k1, k2 = jax.random.split(key)
    style = jax.random.normal(k1, (B, C), dtype=jnp.float32)
    fmap = jax.random.normal(k2, (B, C, H, W), dtype=jnp.float32)
    cols = jnp.arange(W)
    mask = (cols[None, :] < W // 2).astype(jnp.float32) * jnp.ones((H, 1), jnp.float32)

    new_fmap, out_style = apply_masked_style(fmap, style, mask, frac, tile_hw=128)
    new_fmap = jax.block_until_ready(new_fmap)
    ref = _reference(fmap, style, mask, frac)
    assert jnp.allclose(new_fmap, ref, atol=1e-5, rtol=1e-5), "fmap mismatch (f32)"
    assert jnp.array_equal(out_style, style), "style must pass through unchanged"

    # ---- Case 2: bf16 fmap, small spatial (HW=64 -> padded to 128 lanes) ------
    B2, C2, H2, W2 = 2, 512, 8, 8
    k3, k4 = jax.random.split(k2)
    style_b = jax.random.normal(k3, (B2, C2), dtype=jnp.float32)
    fmap_b = jax.random.normal(k4, (B2, C2, H2, W2), dtype=jnp.float32).astype(jnp.bfloat16)
    cols2 = jnp.arange(W2)
    mask_b = (cols2[None, :] < W2 // 2).astype(jnp.float32) * jnp.ones((H2, 1), jnp.float32)

    new_fmap_b, _ = apply_masked_style(fmap_b, style_b, mask_b, frac)
    new_fmap_b = jax.block_until_ready(new_fmap_b)
    ref_b = _reference(fmap_b.astype(jnp.float32), style_b, mask_b, frac).astype(jnp.bfloat16)
    assert jnp.allclose(new_fmap_b.astype(jnp.float32), ref_b.astype(jnp.float32),
                        atol=2e-2, rtol=2e-2), "fmap mismatch (bf16)"

    print("KERNEL_OK")
</pallas_src>

<mosaic_0001>
module attributes {stable_mosaic.version = 11 : i64} {
  func.func @_apply_masked_style_kernel(%arg0: i32, %arg1: i32, %arg2: memref<1x512x1xf32, #tpu.memory_space<vmem>>, %arg3: memref<1x512x128xf32, #tpu.memory_space<vmem>>, %arg4: memref<1x128xf32, #tpu.memory_space<vmem>>, %arg5: memref<1xf32, #tpu.memory_space<smem>>, %arg6: memref<1x512x128xf32, #tpu.memory_space<vmem>>) attributes {dimension_semantics = [#tpu.dimension_semantics<parallel>, #tpu.dimension_semantics<parallel>], iteration_bounds = array<i64: 2, 2>, scalar_prefetch = 0 : i64, scratch_operands = 0 : i64, tpu.core_type = #tpu.core_type<tc>, window_params = [{transform_indices = @transform_0, window_bounds = array<i64: 1, 512, 1>}, {transform_indices = @transform_1, window_bounds = array<i64: 1, 512, 128>}, {transform_indices = @transform_2, window_bounds = array<i64: 1, 128>}, {transform_indices = @transform_3, window_bounds = array<i64: 1>}, {transform_indices = @transform_4, window_bounds = array<i64: 1, 512, 128>}]} {
    %c0 = arith.constant 0 : index
    %c0_0 = arith.constant 0 : index
    %c0_1 = arith.constant 0 : index
    %0 = vector.load %arg2[%c0, %c0_0, %c0_1] : memref<1x512x1xf32, #tpu.memory_space<vmem>>, vector<1x512x1xf32>
    %1 = vector.shape_cast %0 : vector<1x512x1xf32> to vector<512x1xf32>
    %c0_2 = arith.constant 0 : index
    %c0_3 = arith.constant 0 : index
    %c0_4 = arith.constant 0 : index
    %2 = vector.load %arg3[%c0_2, %c0_3, %c0_4] : memref<1x512x128xf32, #tpu.memory_space<vmem>>, vector<1x512x128xf32>
    %3 = vector.shape_cast %2 : vector<1x512x128xf32> to vector<512x128xf32>
    %c0_5 = arith.constant 0 : index
    %c0_6 = arith.constant 0 : index
    %4 = vector.load %arg4[%c0_5, %c0_6] : memref<1x128xf32, #tpu.memory_space<vmem>>, vector<1x128xf32>
    %c0_7 = arith.constant 0 : index
    %5 = memref.load %arg5[%c0_7] : memref<1xf32, #tpu.memory_space<smem>>
    %6 = tpu.iota {dimensions = array<i32: 0>} : vector<512x1xi32>
    %cst = arith.constant 2.000000e+01 : f32
    %7 = arith.mulf %5, %cst : f32
    %c265_i32 = arith.constant 265 : i32
    %8 = vector.broadcast %c265_i32 : i32 to vector<512x1xi32>
    %9 = arith.cmpi eq, %6, %8 : vector<512x1xi32>
    %10 = vector.broadcast %7 : f32 to vector<512x1xf32>
    %11 = arith.subf %10, %1 : vector<512x1xf32>
    %cst_8 = arith.constant 0.000000e+00 : f32
    %12 = vector.broadcast %cst_8 : f32 to vector<512x1xf32>
    %13 = arith.select %9, %11, %12 : vector<512x1xi1>, vector<512x1xf32>
    %14 = vector.broadcast %13 : vector<512x1xf32> to vector<512x128xf32>
    %15 = vector.broadcast %4 : vector<1x128xf32> to vector<512x128xf32>
    %16 = arith.mulf %14, %15 : vector<512x128xf32>
    %17 = vector.broadcast %1 : vector<512x1xf32> to vector<512x128xf32>
    %18 = arith.addf %17, %16 : vector<512x128xf32>
    %19 = arith.mulf %18, %3 : vector<512x128xf32>
    %c0_9 = arith.constant 0 : index
    %c0_10 = arith.constant 0 : index
    %c0_11 = arith.constant 0 : index
    %20 = vector.load %arg6[%c0_9, %c0_10, %c0_11] : memref<1x512x128xf32, #tpu.memory_space<vmem>>, vector<1x512x128xf32>
    %21 = vector.shape_cast %20 : vector<1x512x128xf32> to vector<512x128xf32>
    %22 = vector.shape_cast %19 : vector<512x128xf32> to vector<1x512x128xf32>
    tpu.vector_store %arg6[%c0_9, %c0_10, %c0_11], %22 {strides = array<i32>} : memref<1x512x128xf32, #tpu.memory_space<vmem>>, vector<1x512x128xf32>,
    return
  }
  func.func @transform_0(%arg0: i32, %arg1: i32) -> (i32, i32, i32) {
    %c0_i32 = arith.constant 0 : i32
    %c0_i32_0 = arith.constant 0 : i32
    %c0_i32_1 = arith.constant 0 : i32
    return %arg0, %c0_i32, %c0_i32_0 : i32, i32, i32
  }
  func.func @transform_1(%arg0: i32, %arg1: i32) -> (i32, i32, i32) {
    %c0_i32 = arith.constant 0 : i32
    %c0_i32_0 = arith.constant 0 : i32
    return %arg0, %c0_i32, %arg1 : i32, i32, i32
  }
  func.func @transform_2(%arg0: i32, %arg1: i32) -> (i32, i32) {
    %c0_i32 = arith.constant 0 : i32
    %c0_i32_0 = arith.constant 0 : i32
    return %c0_i32, %arg1 : i32, i32
  }
  func.func @transform_3(%arg0: i32, %arg1: i32) -> i32 {
    %c0_i32 = arith.constant 0 : i32
    %c0_i32_0 = arith.constant 0 : i32
    return %c0_i32 : i32
  }
  func.func @transform_4(%arg0: i32, %arg1: i32) -> (i32, i32, i32) {
    %c0_i32 = arith.constant 0 : i32
    %c0_i32_0 = arith.constant 0 : i32
    return %arg0, %c0_i32, %arg1 : i32, i32, i32
  }
}

</mosaic_0001>

<llo_original>
// kernel: tpu_custom_call.1
$region0: #{tpu_custom_call.1}
  #allocation0 [shape = 'u32[]', space=smem, size = 0x4, offset = 0x4, fixed_abs, tag = 'smem constant byte address 0x4 - core index']
  #allocation1 [shape = 'u32[72,128]{1,0:T(1,128)}', space=vmem, size = 0x9000, scoped, tag = 'internal scratch']
  #allocation2 [shape = 'f32[1]{0:T(128)S(6)}', space=smem, size = 0x200, scoped, tag = 'scoped memory for tpu_custom_call.1']
  %s0 = inlined_call_operand.vmem [shape: f32[2,512,1], index: 0, kind: input, shape index: {}]
  %s1 = inlined_call_operand.hbm [shape: f32[2,512,256], index: 1, kind: input, shape index: {}, may-alias: {1,4}]
  %s2 = inlined_call_operand.vmem [shape: f32[1,256], index: 2, kind: input, shape index: {}]
  %s3 = inlined_call_operand.<no memory space> [shape: f32[1], index: 3, kind: input, shape index: {}]
  %s4 = inlined_call_operand.hbm [shape: f32[2,512,256], index: 4, kind: output, shape index: {}, may-alias: {1,4}]
  %s5 = sld [smem:[#allocation0]]
  $region53: #{tpu_custom_call.1} parent=0
    _
  %s7 = ssub.s32 1, %s5
  %s8 = scalar_select 0, %s7, %s5
  %9 = sst [smem:[#allocation2]] %s3
  $region1: #{tpu_custom_call.1} parent=0
    #allocation3 [shape = 'u8[524288]{0}', space=vmem, size = 0x80000, scoped, tag = 'input window, operand 1']
    #allocation4 [shape = 's32[2]{0}', space=sflag, size = 0x8, scoped, tag = 'scoped memory for tpu_custom_call.1']
    #allocation5 [shape = 's32[2]{0}', space=sflag, size = 0x8, scoped, tag = 'scoped memory for tpu_custom_call.1']
    #allocation6 [shape = 'u8[524288]{0}', space=vmem, size = 0x80000, scoped, tag = 'output window, operand 0']
    %10 = vsyncpa [#allocation4], 0
    %s11 = scalar_lea.sflag [#allocation4], 1
    %12 = vsyncpa %s11, 0
    %13 = vsyncpa [#allocation5], 0
    %s14 = scalar_lea.sflag [#allocation5], 1
    %15 = vsyncpa %s14, 0
    loop: start=0, step=1, limit=6
    $region2: #{tpu_custom_call.1} parent=1 // loop_pre_header
      _
    $region3: #{tpu_custom_call.1} parent=1 // loop_header
      %s17 = sphi 0, %s21
      %p18 = scmp.ge.s32.totalorder %s17, 6
      %s24 = sphi 0, %s36
      %s25 = sphi 0, %s32
      %s26 = sphi 0, %s24
      %s27 = sphi 0, %s25
      %s28 = sphi 0, %s26
      %s29 = sphi 0, %s27
      %s39 = sphi 0, %s41
      %s42 = sphi 0, %s39
      %s43 = sphi 0, %s42
      %s59 = sphi 0, %s43
      %s67 = sphi 0, %s69
      %s70 = sphi 0, %s67
      %s71 = sphi 0, %s70
      %s87 = sphi 0, %s71
      %s93 = sphi 0, %s95
      %s96 = sphi 0, %s93
      %s97 = sphi 0, %s96
      %s113 = sphi 0, %s97
      %s117 = sphi 0, %s117
      %s119 = sphi 0, %s117
      %s120 = sphi 0, %s119
      %s134 = sphi 0, %s120
      %s142 = sphi 0, %s144
      %s145 = sphi 0, %s142
      %s146 = sphi 0, %s145
      %s162 = sphi 0, %s146
    $region4: #{tpu_custom_call.1} parent=1 // loop_header_branch
      %20 = sbr.rel (%p18) target = $region8
    $region5: #{tpu_custom_call.1} parent=1 // loop_body
      %s22 = ssub.s32 %s17, 1
      %s23 = ssub.s32 %s17, 2
      %s30 = sadd.s32 1, %s25
      %p31 = scmp.ge.s32.totalorder %s30, 2
      %s32 = scalar_select %p31, 0, %s30
      %s33 = sadd.s32 1, %s24
      %s34 = scalar_select %p31, %s33, %s24
      %p35 = scmp.ge.s32.totalorder %s34, 2
      %s36 = scalar_select %p35, 0, %s34
      %s37 = ssub.s32 %s24, %s36
      %p38 = scmp.eq.s32.totalorder %s37, 0
      %s40 = sadd.s32 %s39, 1
      %s41 = scalar_select %p38, %s39, %s40
      %p44 = pneg %p38
      %p45 = scmp.eq.s32.totalorder %s17, 3
      %p46 = por %p44, %p45
      %p47 = scmp.ne.s32.totalorder %s39, %s42
      %p48 = scmp.eq.s32.totalorder %s17, 0
      %p49 = por %p47, %p48
      %p50 = scmp.ne.s32.totalorder %s39, %s42
      %p51 = scmp.eq.s32.totalorder %s22, 3
      %p52 = por %p50, %p51
      %p53 = scmp.ne.s32.totalorder %s42, %s43
      %p54 = scmp.eq.s32.totalorder %s22, 0
      %p55 = por %p53, %p54
      %p56 = scmp.ne.s32.totalorder %s42, %s43
      %p57 = scmp.eq.s32.totalorder %s23, 3
      %p58 = por %p56, %p57
      %p60 = scmp.ne.s32.totalorder %s43, %s59
      %p61 = scmp.eq.s32.totalorder %s23, 0
      %p62 = por %p60, %p61
      %s63 = ssub.s32 %s24, %s36
      %s64 = ssub.s32 %s25, %s32
      %s65 = sor.u32 %s63, %s64
      %p66 = scmp.eq.s32.totalorder %s65, 0
      %s68 = sadd.s32 %s67, 1
      %s69 = scalar_select %p66, %s67, %s68
      %p72 = pneg %p66
      %p73 = scmp.eq.s32.totalorder %s17, 3
      %p74 = por %p72, %p73
      %p75 = scmp.ne.s32.totalorder %s67, %s70
      %p76 = scmp.eq.s32.totalorder %s17, 0
      %p77 = por %p75, %p76
      %p78 = scmp.ne.s32.totalorder %s67, %s70
      %p79 = scmp.eq.s32.totalorder %s22, 3
      %p80 = por %p78, %p79
      %p81 = scmp.ne.s32.totalorder %s70, %s71
      %p82 = scmp.eq.s32.totalorder %s22, 0
      %p83 = por %p81, %p82
      %p84 = scmp.ne.s32.totalorder %s70, %s71
      %p85 = scmp.eq.s32.totalorder %s23, 3
      %p86 = por %p84, %p85
      %p88 = scmp.ne.s32.totalorder %s71, %s87
      %p89 = scmp.eq.s32.totalorder %s23, 0
      %p90 = por %p88, %p89
      %s91 = ssub.s32 %s25, %s32
      %p92 = scmp.eq.s32.totalorder %s91, 0
      %s94 = sadd.s32 %s93, 1
      %s95 = scalar_select %p92, %s93, %s94
      %p98 = pneg %p92
      %p99 = scmp.eq.s32.totalorder %s17, 3
      %p100 = por %p98, %p99
      %p101 = scmp.ne.s32.totalorder %s93, %s96
      %p102 = scmp.eq.s32.totalorder %s17, 0
      %p103 = por %p101, %p102
      %p104 = scmp.ne.s32.totalorder %s93, %s96
      %p105 = scmp.eq.s32.totalorder %s22, 3
      %p106 = por %p104, %p105
      %p107 = scmp.ne.s32.totalorder %s96, %s97
      %p108 = scmp.eq.s32.totalorder %s22, 0
      %p109 = por %p107, %p108
      %p110 = scmp.ne.s32.totalorder %s96, %s97
      %p111 = scmp.eq.s32.totalorder %s23, 3
      %p112 = por %p110, %p111
      %p114 = scmp.ne.s32.totalorder %s97, %s113
      %p115 = scmp.eq.s32.totalorder %s23, 0
      %p116 = por %p114, %p115
      %s118 = sadd.s32 %s117, 1
      %p121 = scmp.eq.s32.totalorder %s17, 3
      %p122 = scmp.ne.s32.totalorder %s117, %s119
      %p123 = scmp.eq.s32.totalorder %s17, 0
      %p124 = por %p122, %p123
      %p125 = scmp.ne.s32.totalorder %s117, %s119
      %p126 = scmp.eq.s32.totalorder %s22, 3
      %p127 = por %p125, %p126
      %p128 = scmp.ne.s32.totalorder %s119, %s120
      %p129 = scmp.eq.s32.totalorder %s22, 0
      %p130 = por %p128, %p129
      %p131 = scmp.ne.s32.totalorder %s119, %s120
      %p132 = scmp.eq.s32.totalorder %s23, 3
      %p133 = por %p131, %p132
      %p135 = scmp.ne.s32.totalorder %s120, %s134
      %p136 = scmp.eq.s32.totalorder %s23, 0
      %p137 = por %p135, %p136
      %s138 = ssub.s32 %s24, %s36
      %s139 = ssub.s32 %s25, %s32
      %s140 = sor.u32 %s138, %s139
      %p141 = scmp.eq.s32.totalorder %s140, 0
      %s143 = sadd.s32 %s142, 1
      %s144 = scalar_select %p141, %s142, %s143
      %p147 = pneg %p141
      %p148 = scmp.eq.s32.totalorder %s17, 3
      %p149 = por %p147, %p148
      %p150 = scmp.ne.s32.totalorder %s142, %s145
      %p151 = scmp.eq.s32.totalorder %s17, 0
      %p152 = por %p150, %p151
      %p153 = scmp.ne.s32.totalorder %s142, %s145
      %p154 = scmp.eq.s32.totalorder %s22, 3
      %p155 = por %p153, %p154
      %p156 = scmp.ne.s32.totalorder %s145, %s146
      %p157 = scmp.eq.s32.totalorder %s22, 0
      %p158 = por %p156, %p157
      %p159 = scmp.ne.s32.totalorder %s145, %s146
      %p160 = scmp.eq.s32.totalorder %s23, 3
      %p161 = por %p159, %p160
      %p163 = scmp.ne.s32.totalorder %s146, %s162
      %p164 = scmp.eq.s32.totalorder %s23, 0
      %p165 = por %p163, %p164
      %p166 = scmp.le.s32.totalorder 1, %s17
      %p167 = scmp.lt.s32.totalorder %s17, 5
      %p168 = pnand %p166, %p167
      %p169 = pneg %p168
      // Predicated region
      $region9: #{tpu_custom_call.1} parent=5 // pred_check
        _
      $region10: #{tpu_custom_call.1} parent=5 // pred_check_branch
        %171 = sbr.rel (%p168) target = $region12
      $region11: #{tpu_custom_call.1} parent=5 // pred_region
        %s172 = ssub.s32 %s17, 1
        // Predicated region
        $region13: #{tpu_custom_call.1} parent=11 // pred_check
          %p173 = pneg %p130
        $region14: #{tpu_custom_call.1} parent=11 // pred_check_branch
          %175 = sbr.rel (%p173) target = $region16
        $region15: #{tpu_custom_call.1} parent=11 // pred_region
          _
        $region16: #{tpu_custom_call.1} parent=11 // pred_fallthru
          _
      $region12: #{tpu_custom_call.1} parent=5 // pred_fallthru
        _
      %p176 = scmp.lt.s32.totalorder %s17, 4
      // Predicated region
      $region17: #{tpu_custom_call.1} parent=5 // pred_check
        %p177 = pneg %p176
      $region18: #{tpu_custom_call.1} parent=5 // pred_check_branch
        %179 = sbr.rel (%p177) target = $region20
      $region19: #{tpu_custom_call.1} parent=5 // pred_region
        // Predicated region
        $region21: #{tpu_custom_call.1} parent=19 // pred_check
          %p180 = pneg %p49
        $region22: #{tpu_custom_call.1} parent=19 // pred_check_branch
          %182 = sbr.rel (%p180) target = $region24
        $region23: #{tpu_custom_call.1} parent=19 // pred_region
          %p183 = scmp.lt.s32.totalorder %s24, 1
          %s184 = scalar_select %p183, %s24, 1
          %s185 = smul.addr %s184, 64
          %s186 = smul.addr %s185, 8
          %s187 = scalar_lea.vmem %s0, %s186
        $region24: #{tpu_custom_call.1} parent=19 // pred_fallthru
          _
        // Predicated region
        $region25: #{tpu_custom_call.1} parent=19 // pred_check
          %p188 = pneg %p77
        $region26: #{tpu_custom_call.1} parent=19 // pred_check_branch
          %190 = sbr.rel (%p188) target = $region28
        $region27: #{tpu_custom_call.1} parent=19 // pred_region
          %s191 = sand.u32 %s67, 1
          %s192 = scalar_lea.sflag [#allocation4], %s191
          %s193 = sand.u32 %s67, 1
          %s194 = smul.addr %s193, 512
          %s195 = scalar_lea.vmem [#allocation3], %s194
          %197 = vsyncadd %s192, 0
          %s198 = smul.addr %s24, 128
          %s199 = sadd.s32 %s25, %s198
          %s200 = smul.addr %s199, 8
          %s201 = scalar_lea.hbm %s1, %s200
          %s202 = sshll.u32 %s201, 4
          %s203 = int_to_ptr.hbm [resolvable:$true] %s202
          %s204 = sshll.u32 %s195, 4
          %s205 = int_to_ptr.vmem [resolvable:$true] %s204
          %210 = dma.hbm_to_vmem [thread:$0]  %s203, 8192, %s205, %s192, 256, 128, 8
        $region28: #{tpu_custom_call.1} parent=19 // pred_fallthru
          _
        // Predicated region
        $region29: #{tpu_custom_call.1} parent=19 // pred_check
          %p211 = pneg %p103
        $region30: #{tpu_custom_call.1} parent=19 // pred_check_branch
          %213 = sbr.rel (%p211) target = $region32
        $region31: #{tpu_custom_call.1} parent=19 // pred_region
          %p214 = scmp.lt.s32.totalorder %s25, 1
          %s215 = scalar_select %p214, %s25, 1
          %s216 = scalar_lea.vmem %s2, %s215
        $region32: #{tpu_custom_call.1} parent=19 // pred_fallthru
          _
      $region20: #{tpu_custom_call.1} parent=5 // pred_fallthru
        _
      %p217 = scmp.le.s32.totalorder 1, %s17
      %p218 = scmp.lt.s32.totalorder %s17, 5
      %p219 = pnand %p217, %p218
      %p220 = pneg %p219
      // Predicated region
      $region33: #{tpu_custom_call.1} parent=5 // pred_check
        _
      $region34: #{tpu_custom_call.1} parent=5 // pred_check_branch
        %222 = sbr.rel (%p219) target = $region36
      $region35: #{tpu_custom_call.1} parent=5 // pred_region
        %s223 = ssub.s32 %s17, 1
        %s224 = sand.u32 %s70, 1
        %s225 = scalar_lea.sflag [#allocation4], %s224
        %s226 = sand.u32 %s70, 1
        %s227 = smul.addr %s226, 512
        %s228 = scalar_lea.vmem [#allocation3], %s227
        // Predicated region
        $region37: #{tpu_custom_call.1} parent=35 // pred_check
          %p229 = pneg %p83
        $region38: #{tpu_custom_call.1} parent=35 // pred_check_branch
          %231 = sbr.rel (%p229) target = $region40
        $region39: #{tpu_custom_call.1} parent=35 // pred_region
          %233 = dma.done %s225, 8192
        $region40: #{tpu_custom_call.1} parent=35 // pred_fallthru
          _
        %p234 = scmp.lt.s32.totalorder %s26, 1
        %s235 = scalar_select %p234, %s26, 1
        %s236 = smul.addr %s235, 64
        %s237 = smul.addr %s236, 8
        %s238 = scalar_lea.vmem %s0, %s237
        %p239 = pneg %p55
        %p240 = pneg %p52
        %s241 = sand.u32 %s70, 1
        %s242 = scalar_lea.sflag [#allocation4], %s241
        %s243 = sand.u32 %s70, 1
        %s244 = smul.addr %s243, 512
        %s245 = scalar_lea.vmem [#allocation3], %s244
        %p246 = pneg %p83
        %p247 = pneg %p80
        %p248 = scmp.lt.s32.totalorder %s27, 1
        %s249 = scalar_select %p248, %s27, 1
        %s250 = scalar_lea.vmem %s2, %s249
        %p251 = pneg %p109
        %p252 = pneg %p106
        %p253 = pneg %p130
        %p254 = pneg %p127
        %p255 = pneg %p158
        %p256 = pneg %p155
        %s257 = sand.u32 %s145, 1
        %s258 = scalar_lea.sflag [#allocation5], %s257
        %s259 = sand.u32 %s145, 1
        %s260 = smul.addr %s259, 512
        %s261 = scalar_lea.vmem [#allocation6], %s260
        %p262 = scmp.lt.s32.totalorder %s26, 1
        %s263 = scalar_select %p262, %s26, 1
        %s264 = smul.addr %s263, 64
        %s265 = smul.addr %s264, 8
        %s266 = scalar_lea.vmem %s0, %s265
        %p267 = scmp.lt.s32.totalorder %s27, 1
        %s268 = scalar_select %p267, %s27, 1
        %s269 = scalar_lea.vmem %s2, %s268
        %v270 = vld [vmem:[%s266] sm:$0xff]
        %v271 = vld [vmem:[%s266 + $0x8] sm:$0xff]
        %v272 = vld [vmem:[%s266 + $0x10] sm:$0xff]
        %v273 = vld [vmem:[%s266 + $0x18] sm:$0xff]
        %v274 = vld [vmem:[%s266 + $0x20] sm:$0xff]
        %v275 = vld [vmem:[%s266 + $0x28] sm:$0xff]
        %v276 = vld [vmem:[%s266 + $0x30] sm:$0xff]
        %v277 = vld [vmem:[%s266 + $0x38] sm:$0xff]
        %v278 = vld [vmem:[%s266 + $0x40] sm:$0xff]
        %v279 = vld [vmem:[%s266 + $0x48] sm:$0xff]
        %v280 = vld [vmem:[%s266 + $0x50] sm:$0xff]
        %v281 = vld [vmem:[%s266 + $0x58] sm:$0xff]
        %v282 = vld [vmem:[%s266 + $0x60] sm:$0xff]
        %v283 = vld [vmem:[%s266 + $0x68] sm:$0xff]
        %v284 = vld [vmem:[%s266 + $0x70] sm:$0xff]
        %v285 = vld [vmem:[%s266 + $0x78] sm:$0xff]
        %v286 = vld [vmem:[%s266 + $0x80] sm:$0xff]
        %v287 = vld [vmem:[%s266 + $0x88] sm:$0xff]
        %v288 = vld [vmem:[%s266 + $0x90] sm:$0xff]
        %v289 = vld [vmem:[%s266 + $0x98] sm:$0xff]
        %v290 = vld [vmem:[%s266 + $0xa0] sm:$0xff]
        %v291 = vld [vmem:[%s266 + $0xa8] sm:$0xff]
        %v292 = vld [vmem:[%s266 + $0xb0] sm:$0xff]
        %v293 = vld [vmem:[%s266 + $0xb8] sm:$0xff]
        %v294 = vld [vmem:[%s266 + $0xc0] sm:$0xff]
        %v295 = vld [vmem:[%s266 + $0xc8] sm:$0xff]
        %v296 = vld [vmem:[%s266 + $0xd0] sm:$0xff]
        %v297 = vld [vmem:[%s266 + $0xd8] sm:$0xff]
        %v298 = vld [vmem:[%s266 + $0xe0] sm:$0xff]
        %v299 = vld [vmem:[%s266 + $0xe8] sm:$0xff]
        %v300 = vld [vmem:[%s266 + $0xf0] sm:$0xff]
        %v301 = vld [vmem:[%s266 + $0xf8] sm:$0xff]
        %v302 = vld [vmem:[%s266 + $0x100] sm:$0xff]
        %v303 = vld [vmem:[%s266 + $0x108] sm:$0xff]
        %v304 = vld [vmem:[%s266 + $0x110] sm:$0xff]
        %v305 = vld [vmem:[%s266 + $0x118] sm:$0xff]
        %v306 = vld [vmem:[%s266 + $0x120] sm:$0xff]
        %v307 = vld [vmem:[%s266 + $0x128] sm:$0xff]
        %v308 = vld [vmem:[%s266 + $0x130] sm:$0xff]
        %v309 = vld [vmem:[%s266 + $0x138] sm:$0xff]
        %v310 = vld [vmem:[%s266 + $0x140] sm:$0xff]
        %v311 = vld [vmem:[%s266 + $0x148] sm:$0xff]
        %v312 = vld [vmem:[%s266 + $0x150] sm:$0xff]
        %v313 = vld [vmem:[%s266 + $0x158] sm:$0xff]
        %v314 = vld [vmem:[%s266 + $0x160] sm:$0xff]
        %v315 = vld [vmem:[%s266 + $0x168] sm:$0xff]
        %v316 = vld [vmem:[%s266 + $0x170] sm:$0xff]
        %v317 = vld [vmem:[%s266 + $0x178] sm:$0xff]
        %v318 = vld [vmem:[%s266 + $0x180] sm:$0xff]
        %v319 = vld [vmem:[%s266 + $0x188] sm:$0xff]
        %v320 = vld [vmem:[%s266 + $0x190] sm:$0xff]
        %v321 = vld [vmem:[%s266 + $0x198] sm:$0xff]
        %v322 = vld [vmem:[%s266 + $0x1a0] sm:$0xff]
        %v323 = vld [vmem:[%s266 + $0x1a8] sm:$0xff]
        %v324 = vld [vmem:[%s266 + $0x1b0] sm:$0xff]
        %v325 = vld [vmem:[%s266 + $0x1b8] sm:$0xff]
        %v326 = vld [vmem:[%s266 + $0x1c0] sm:$0xff]
        %v327 = vld [vmem:[%s266 + $0x1c8] sm:$0xff]
        %v328 = vld [vmem:[%s266 + $0x1d0] sm:$0xff]
        %v329 = vld [vmem:[%s266 + $0x1d8] sm:$0xff]
        %v330 = vld [vmem:[%s266 + $0x1e0] sm:$0xff]
        %v331 = vld [vmem:[%s266 + $0x1e8] sm:$0xff]
        %v332 = vld [vmem:[%s266 + $0x1f0] sm:$0xff]
        %v333 = vld [vmem:[%s266 + $0x1f8] sm:$0xff]
        %v334 = vld [vmem:[%s228] sm:$0xff]
        %v335 = vld [vmem:[%s228 + $0x8] sm:$0xff]
        %v336 = vld [vmem:[%s228 + $0x10] sm:$0xff]
        %v337 = vld [vmem:[%s228 + $0x18] sm:$0xff]
        %v338 = vld [vmem:[%s228 + $0x20] sm:$0xff]
        %v339 = vld [vmem:[%s228 + $0x28] sm:$0xff]
        %v340 = vld [vmem:[%s228 + $0x30] sm:$0xff]
        %v341 = vld [vmem:[%s228 + $0x38] sm:$0xff]
        %v342 = vld [vmem:[%s228 + $0x40] sm:$0xff]
        %v343 = vld [vmem:[%s228 + $0x48] sm:$0xff]
        %v344 = vld [vmem:[%s228 + $0x50] sm:$0xff]
        %v345 = vld [vmem:[%s228 + $0x58] sm:$0xff]
        %v346 = vld [vmem:[%s228 + $0x60] sm:$0xff]
        %v347 = vld [vmem:[%s228 + $0x68] sm:$0xff]
        %v348 = vld [vmem:[%s228 + $0x70] sm:$0xff]
        %v349 = vld [vmem:[%s228 + $0x78] sm:$0xff]
        %v350 = vld [vmem:[%s228 + $0x80] sm:$0xff]
        %v351 = vld [vmem:[%s228 + $0x88] sm:$0xff]
        %v352 = vld [vmem:[%s228 + $0x90] sm:$0xff]
        %v353 = vld [vmem:[%s228 + $0x98] sm:$0xff]
        %v354 = vld [vmem:[%s228 + $0xa0] sm:$0xff]
        %v355 = vld [vmem:[%s228 + $0xa8] sm:$0xff]
        %v356 = vld [vmem:[%s228 + $0xb0] sm:$0xff]
        %v357 = vld [vmem:[%s228 + $0xb8] sm:$0xff]
        %v358 = vld [vmem:[%s228 + $0xc0] sm:$0xff]
        %v359 = vld [vmem:[%s228 + $0xc8] sm:$0xff]
        %v360 = vld [vmem:[%s228 + $0xd0] sm:$0xff]
        %v361 = vld [vmem:[%s228 + $0xd8] sm:$0xff]
        %v362 = vld [vmem:[%s228 + $0xe0] sm:$0xff]
        %v363 = vld [vmem:[%s228 + $0xe8] sm:$0xff]
        %v364 = vld [vmem:[%s228 + $0xf0] sm:$0xff]
        %v365 = vld [vmem:[%s228 + $0xf8] sm:$0xff]
        %v366 = vld [vmem:[%s228 + $0x100] sm:$0xff]
        %v367 = vld [vmem:[%s228 + $0x108] sm:$0xff]
        %v368 = vld [vmem:[%s228 + $0x110] sm:$0xff]
        %v369 = vld [vmem:[%s228 + $0x118] sm:$0xff]
        %v370 = vld [vmem:[%s228 + $0x120] sm:$0xff]
        %v371 = vld [vmem:[%s228 + $0x128] sm:$0xff]
        %v372 = vld [vmem:[%s228 + $0x130] sm:$0xff]
        %v373 = vld [vmem:[%s228 + $0x138] sm:$0xff]
        %v374 = vld [vmem:[%s228 + $0x140] sm:$0xff]
        %v375 = vld [vmem:[%s228 + $0x148] sm:$0xff]
        %v376 = vld [vmem:[%s228 + $0x150] sm:$0xff]
        %v377 = vld [vmem:[%s228 + $0x158] sm:$0xff]
        %v378 = vld [vmem:[%s228 + $0x160] sm:$0xff]
        %v379 = vld [vmem:[%s228 + $0x168] sm:$0xff]
        %v380 = vld [vmem:[%s228 + $0x170] sm:$0xff]
        %v381 = vld [vmem:[%s228 + $0x178] sm:$0xff]
        %v382 = vld [vmem:[%s228 + $0x180] sm:$0xff]
        %v383 = vld [vmem:[%s228 + $0x188] sm:$0xff]
        %v384 = vld [vmem:[%s228 + $0x190] sm:$0xff]
        %v385 = vld [vmem:[%s228 + $0x198] sm:$0xff]
        %v386 = vld [vmem:[%s228 + $0x1a0] sm:$0xff]
        %v387 = vld [vmem:[%s228 + $0x1a8] sm:$0xff]
        %v388 = vld [vmem:[%s228 + $0x1b0] sm:$0xff]
        %v389 = vld [vmem:[%s228 + $0x1b8] sm:$0xff]
        %v390 = vld [vmem:[%s228 + $0x1c0] sm:$0xff]
        %v391 = vld [vmem:[%s228 + $0x1c8] sm:$0xff]
        %v392 = vld [vmem:[%s228 + $0x1d0] sm:$0xff]
        %v393 = vld [vmem:[%s228 + $0x1d8] sm:$0xff]
        %v394 = vld [vmem:[%s228 + $0x1e0] sm:$0xff]
        %v395 = vld [vmem:[%s228 + $0x1e8] sm:$0xff]
        %v396 = vld [vmem:[%s228 + $0x1f0] sm:$0xff]
        %v397 = vld [vmem:[%s228 + $0x1f8] sm:$0xff]
        %v398 = vld [vmem:[%s269] sm:$0x1]
        %s399 = sld [smem:[#allocation2]]
        %v400 = vlaneseq
        %v401 = vshrl.u32 %v400, 7
        %v402 = vadd.s32 %v401, 8
        %v403 = vadd.s32 %v401, 16
        %v404 = vadd.s32 %v401, 24
        %v405 = vadd.s32 %v401, 32
        %v406 = vadd.s32 %v401, 40
        %v407 = vadd.s32 %v401, 48
        %v408 = vadd.s32 %v401, 56
        %v409 = vadd.s32 %v401, 64
        %v410 = vadd.s32 %v401, 72
        %v411 = vadd.s32 %v401, 80
        %v412 = vadd.s32 %v401, 88
        %v413 = vadd.s32 %v401, 96
        %v414 = vadd.s32 %v401, 104
        %v415 = vadd.s32 %v401, 112
        %v416 = vadd.s32 %v401, 120
        %v417 = vadd.s32 %v401, 128
        %v418 = vadd.s32 %v401, 136
        %v419 = vadd.s32 %v401, 144
        %v420 = vadd.s32 %v401, 152
        %v421 = vadd.s32 %v401, 160
        %v422 = vadd.s32 %v401, 168
        %v423 = vadd.s32 %v401, 176
        %v424 = vadd.s32 %v401, 184
        %v425 = vadd.s32 %v401, 192
        %v426 = vadd.s32 %v401, 200
        %v427 = vadd.s32 %v401, 208
        %v428 = vadd.s32 %v401, 216
        %v429 = vadd.s32 %v401, 224
        %v430 = vadd.s32 %v401, 232
        %v431 = vadd.s32 %v401, 240
        %v432 = vadd.s32 %v401, 248
        %v433 = vadd.s32 %v401, 256
        %v434 = vadd.s32 %v401, 264
        %v435 = vadd.s32 %v401, 272
        %v436 = vadd.s32 %v401, 280
        %v437 = vadd.s32 %v401, 288
        %v438 = vadd.s32 %v401, 296
        %v439 = vadd.s32 %v401, 304
        %v440 = vadd.s32 %v401, 312
        %v441 = vadd.s32 %v401, 320
        %v442 = vadd.s32 %v401, 328
        %v443 = vadd.s32 %v401, 336
        %v444 = vadd.s32 %v401, 344
        %v445 = vadd.s32 %v401, 352
        %v446 = vadd.s32 %v401, 360
        %v447 = vadd.s32 %v401, 368
        %v448 = vadd.s32 %v401, 376
        %v449 = vadd.s32 %v401, 384
        %v450 = vadd.s32 %v401, 392
        %v451 = vadd.s32 %v401, 400
        %v452 = vadd.s32 %v401, 408
        %v453 = vadd.s32 %v401, 416
        %v454 = vadd.s32 %v401, 424
        %v455 = vadd.s32 %v401, 432
        %v456 = vadd.s32 %v401, 440
        %v457 = vadd.s32 %v401, 448
        %v458 = vadd.s32 %v401, 456
        %v459 = vadd.s32 %v401, 464
        %v460 = vadd.s32 %v401, 472
        %v461 = vadd.s32 %v401, 480
        %v462 = vadd.s32 %v401, 488
        %v463 = vadd.s32 %v401, 496
        %v464 = vadd.s32 %v401, 504
        %s465 = smul.f32 %s399, 20.0
        %vm466 = vcmp.eq.s32.totalorder %v401, 265
        %vm467 = vcmp.eq.s32.totalorder %v402, 265
        %vm468 = vcmp.eq.s32.totalorder %v403, 265
        %vm469 = vcmp.eq.s32.totalorder %v404, 265
        %vm470 = vcmp.eq.s32.totalorder %v405, 265
        %vm471 = vcmp.eq.s32.totalorder %v406, 265
        %vm472 = vcmp.eq.s32.totalorder %v407, 265
        %vm473 = vcmp.eq.s32.totalorder %v408, 265
        %vm474 = vcmp.eq.s32.totalorder %v409, 265
        %vm475 = vcmp.eq.s32.totalorder %v410, 265
        %vm476 = vcmp.eq.s32.totalorder %v411, 265
        %vm477 = vcmp.eq.s32.totalorder %v412, 265
        %vm478 = vcmp.eq.s32.totalorder %v413, 265
        %vm479 = vcmp.eq.s32.totalorder %v414, 265
        %vm480 = vcmp.eq.s32.totalorder %v415, 265
        %vm481 = vcmp.eq.s32.totalorder %v416, 265
        %vm482 = vcmp.eq.s32.totalorder %v417, 265
        %vm483 = vcmp.eq.s32.totalorder %v418, 265
        %vm484 = vcmp.eq.s32.totalorder %v419, 265
        %vm485 = vcmp.eq.s32.totalorder %v420, 265
        %vm486 = vcmp.eq.s32.totalorder %v421, 265
        %vm487 = vcmp.eq.s32.totalorder %v422, 265
        %vm488 = vcmp.eq.s32.totalorder %v423, 265
        %vm489 = vcmp.eq.s32.totalorder %v424, 265
        %vm490 = vcmp.eq.s32.totalorder %v425, 265
        %vm491 = vcmp.eq.s32.totalorder %v426, 265
        %vm492 = vcmp.eq.s32.totalorder %v427, 265
        %vm493 = vcmp.eq.s32.totalorder %v428, 265
        %vm494 = vcmp.eq.s32.totalorder %v429, 265
        %vm495 = vcmp.eq.s32.totalorder %v430, 265
        %vm496 = vcmp.eq.s32.totalorder %v431, 265
        %vm497 = vcmp.eq.s32.totalorder %v432, 265
        %vm498 = vcmp.eq.s32.totalorder %v433, 265
        %vm499 = vcmp.eq.s32.totalorder %v434, 265
        %vm500 = vcmp.eq.s32.totalorder %v435, 265
        %vm501 = vcmp.eq.s32.totalorder %v436, 265
        %vm502 = vcmp.eq.s32.totalorder %v437, 265
        %vm503 = vcmp.eq.s32.totalorder %v438, 265
        %vm504 = vcmp.eq.s32.totalorder %v439, 265
        %vm505 = vcmp.eq.s32.totalorder %v440, 265
        %vm506 = vcmp.eq.s32.totalorder %v441, 265
        %vm507 = vcmp.eq.s32.totalorder %v442, 265
        %vm508 = vcmp.eq.s32.totalorder %v443, 265
        %vm509 = vcmp.eq.s32.totalorder %v444, 265
        %vm510 = vcmp.eq.s32.totalorder %v445, 265
        %vm511 = vcmp.eq.s32.totalorder %v446, 265
        %vm512 = vcmp.eq.s32.totalorder %v447, 265
        %vm513 = vcmp.eq.s32.totalorder %v448, 265
        %vm514 = vcmp.eq.s32.totalorder %v449, 265
        %vm515 = vcmp.eq.s32.totalorder %v450, 265
        %vm516 = vcmp.eq.s32.totalorder %v451, 265
        %vm517 = vcmp.eq.s32.totalorder %v452, 265
        %vm518 = vcmp.eq.s32.totalorder %v453, 265
        %vm519 = vcmp.eq.s32.totalorder %v454, 265
        %vm520 = vcmp.eq.s32.totalorder %v455, 265
        %vm521 = vcmp.eq.s32.totalorder %v456, 265
        %vm522 = vcmp.eq.s32.totalorder %v457, 265
        %vm523 = vcmp.eq.s32.totalorder %v458, 265
        %vm524 = vcmp.eq.s32.totalorder %v459, 265
        %vm525 = vcmp.eq.s32.totalorder %v460, 265
        %vm526 = vcmp.eq.s32.totalorder %v461, 265
        %vm527 = vcmp.eq.s32.totalorder %v462, 265
        %vm528 = vcmp.eq.s32.totalorder %v463, 265
        %vm529 = vcmp.eq.s32.totalorder %v464, 265
        %v530 = vstv %s465
        %v531 = vsub.f32 %v530, %v270
        %v532 = vsub.f32 %v530, %v271
        %v533 = vsub.f32 %v530, %v272
        %v534 = vsub.f32 %v530, %v273
        %v535 = vsub.f32 %v530, %v274
        %v536 = vsub.f32 %v530, %v275
        %v537 = vsub.f32 %v530, %v276
        %v538 = vsub.f32 %v530, %v277
        %v539 = vsub.f32 %v530, %v278
        %v540 = vsub.f32 %v530, %v279
        %v541 = vsub.f32 %v530, %v280
        %v542 = vsub.f32 %v530, %v281
        %v543 = vsub.f32 %v530, %v282
        %v544 = vsub.f32 %v530, %v283
        %v545 = vsub.f32 %v530, %v284
        %v546 = vsub.f32 %v530, %v285
        %v547 = vsub.f32 %v530, %v286
        %v548 = vsub.f32 %v530, %v287
        %v549 = vsub.f32 %v530, %v288
        %v550 = vsub.f32 %v530, %v289
        %v551 = vsub.f32 %v530, %v290
        %v552 = vsub.f32 %v530, %v291
        %v553 = vsub.f32 %v530, %v292
        %v554 = vsub.f32 %v530, %v293
        %v555 = vsub.f32 %v530, %v294
        %v556 = vsub.f32 %v530, %v295
        %v557 = vsub.f32 %v530, %v296
        %v558 = vsub.f32 %v530, %v297
        %v559 = vsub.f32 %v530, %v298
        %v560 = vsub.f32 %v530, %v299
        %v561 = vsub.f32 %v530, %v300
        %v562 = vsub.f32 %v530, %v301
        %v563 = vsub.f32 %v530, %v302
        %v564 = vsub.f32 %v530, %v303
        %v565 = vsub.f32 %v530, %v304
        %v566 = vsub.f32 %v530, %v305
        %v567 = vsub.f32 %v530, %v306
        %v568 = vsub.f32 %v530, %v307
        %v569 = vsub.f32 %v530, %v308
        %v570 = vsub.f32 %v530, %v309
        %v571 = vsub.f32 %v530, %v310
        %v572 = vsub.f32 %v530, %v311
        %v573 = vsub.f32 %v530, %v312
        %v574 = vsub.f32 %v530, %v313
        %v575 = vsub.f32 %v530, %v314
        %v576 = vsub.f32 %v530, %v315
        %v577 = vsub.f32 %v530, %v316
        %v578 = vsub.f32 %v530, %v317
        %v579 = vsub.f32 %v530, %v318
        %v580 = vsub.f32 %v530, %v319
        %v581 = vsub.f32 %v530, %v320
        %v582 = vsub.f32 %v530, %v321
        %v583 = vsub.f32 %v530, %v322
        %v584 = vsub.f32 %v530, %v323
        %v585 = vsub.f32 %v530, %v324
        %v586 = vsub.f32 %v530, %v325
        %v587 = vsub.f32 %v530, %v326
        %v588 = vsub.f32 %v530, %v327
        %v589 = vsub.f32 %v530, %v328
        %v590 = vsub.f32 %v530, %v329
        %v591 = vsub.f32 %v530, %v330
        %v592 = vsub.f32 %v530, %v331
        %v593 = vsub.f32 %v530, %v332
        %v594 = vsub.f32 %v530, %v333
        %v595 = vsel %vm466, %v531, 0.0
        %v596 = vsel %vm467, %v532, 0.0
        %v597 = vsel %vm468, %v533, 0.0
        %v598 = vsel %vm469, %v534, 0.0
        %v599 = vsel %vm470, %v535, 0.0
        %v600 = vsel %vm471, %v536, 0.0
        %v601 = vsel %vm472, %v537, 0.0
        %v602 = vsel %vm473, %v538, 0.0
        %v603 = vsel %vm474, %v539, 0.0
        %v604 = vsel %vm475, %v540, 0.0
        %v605 = vsel %vm476, %v541, 0.0
        %v606 = vsel %vm477, %v542, 0.0
        %v607 = vsel %vm478, %v543, 0.0
        %v608 = vsel %vm479, %v544, 0.0
        %v609 = vsel %vm480, %v545, 0.0
        %v610 = vsel %vm481, %v546, 0.0
        %v611 = vsel %vm482, %v547, 0.0
        %v612 = vsel %vm483, %v548, 0.0
        %v613 = vsel %vm484, %v549, 0.0
        %v614 = vsel %vm485, %v550, 0.0
        %v615 = vsel %vm486, %v551, 0.0
        %v616 = vsel %vm487, %v552, 0.0
        %v617 = vsel %vm488, %v553, 0.0
        %v618 = vsel %vm489, %v554, 0.0
        %v619 = vsel %vm490, %v555, 0.0
        %v620 = vsel %vm491, %v556, 0.0
        %v621 = vsel %vm492, %v557, 0.0
        %v622 = vsel %vm493, %v558, 0.0
        %v623 = vsel %vm494, %v559, 0.0
        %v624 = vsel %vm495, %v560, 0.0
        %v625 = vsel %vm496, %v561, 0.0
        %v626 = vsel %vm497, %v562, 0.0
        %v627 = vsel %vm498, %v563, 0.0
        %v628 = vsel %vm499, %v564, 0.0
        %v629 = vsel %vm500, %v565, 0.0
        %v630 = vsel %vm501, %v566, 0.0
        %v631 = vsel %vm502, %v567, 0.0
        %v632 = vsel %vm503, %v568, 0.0
        %v633 = vsel %vm504, %v569, 0.0
        %v634 = vsel %vm505, %v570, 0.0
        %v635 = vsel %vm506, %v571, 0.0
        %v636 = vsel %vm507, %v572, 0.0
        %v637 = vsel %vm508, %v573, 0.0
        %v638 = vsel %vm509, %v574, 0.0
        %v639 = vsel %vm510, %v575, 0.0
        %v640 = vsel %vm511, %v576, 0.0
        %v641 = vsel %vm512, %v577, 0.0
        %v642 = vsel %vm513, %v578, 0.0
        %v643 = vsel %vm514, %v579, 0.0
        %v644 = vsel %vm515, %v580, 0.0
        %v645 = vsel %vm516, %v581, 0.0
        %v646 = vsel %vm517, %v582, 0.0
        %v647 = vsel %vm518, %v583, 0.0
        %v648 = vsel %vm519, %v584, 0.0
        %v649 = vsel %vm520, %v585, 0.0
        %v650 = vsel %vm521, %v586, 0.0
        %v651 = vsel %vm522, %v587, 0.0
        %v652 = vsel %vm523, %v588, 0.0
        %v653 = vsel %vm524, %v589, 0.0
        %v654 = vsel %vm525, %v590, 0.0
        %v655 = vsel %vm526, %v591, 0.0
        %v656 = vsel %vm527, %v592, 0.0
        %v657 = vsel %vm528, %v593, 0.0
        %v658 = vsel %vm529, %v594, 0.0
        %660 = vset.pattern.permute.xlu0 0
        %661 = vperm.xlu0 %660, %v595
        %v662 = vpop.permute.xlu0 %661
        %665 = vset.pattern.permute.xlu0 0
        %666 = vperm.xlu0 %665, %v596
        %v667 = vpop.permute.xlu0 %666
        %670 = vset.pattern.permute.xlu0 0
        %671 = vperm.xlu0 %670, %v597
        %v672 = vpop.permute.xlu0 %671
        %675 = vset.pattern.permute.xlu0 0
        %676 = vperm.xlu0 %675, %v598
        %v677 = vpop.permute.xlu0 %676
        %680 = vset.pattern.permute.xlu0 0
        %681 = vperm.xlu0 %680, %v599
        %v682 = vpop.permute.xlu0 %681
        %685 = vset.pattern.permute.xlu0 0
        %686 = vperm.xlu0 %685, %v600
        %v687 = vpop.permute.xlu0 %686
        %690 = vset.pattern.permute.xlu0 0
        %691 = vperm.xlu0 %690, %v601
        %v692 = vpop.permute.xlu0 %691
        %695 = vset.pattern.permute.xlu0 0
        %696 = vperm.xlu0 %695, %v602
        %v697 = vpop.permute.xlu0 %696
        %700 = vset.pattern.permute.xlu0 0
        %701 = vperm.xlu0 %700, %v603
        %v702 = vpop.permute.xlu0 %701
        %705 = vset.pattern.permute.xlu0 0
        %706 = vperm.xlu0 %705, %v604
        %v707 = vpop.permute.xlu0 %706
        %710 = vset.pattern.permute.xlu0 0
        %711 = vperm.xlu0 %710, %v605
        %v712 = vpop.permute.xlu0 %711
        %715 = vset.pattern.permute.xlu0 0
        %716 = vperm.xlu0 %715, %v606
        %v717 = vpop.permute.xlu0 %716
        %720 = vset.pattern.permute.xlu0 0
        %721 = vperm.xlu0 %720, %v607
        %v722 = vpop.permute.xlu0 %721
        %725 = vset.pattern.permute.xlu0 0
        %726 = vperm.xlu0 %725, %v608
        %v727 = vpop.permute.xlu0 %726
        %730 = vset.pattern.permute.xlu0 0
        %731 = vperm.xlu0 %730, %v609
        %v732 = vpop.permute.xlu0 %731
        %735 = vset.pattern.permute.xlu0 0
        %736 = vperm.xlu0 %735, %v610
        %v737 = vpop.permute.xlu0 %736
        %740 = vset.pattern.permute.xlu0 0
        %741 = vperm.xlu0 %740, %v611
        %v742 = vpop.permute.xlu0 %741
        %745 = vset.pattern.permute.xlu0 0
        %746 = vperm.xlu0 %745, %v612
        %v747 = vpop.permute.xlu0 %746
        %750 = vset.pattern.permute.xlu0 0
        %751 = vperm.xlu0 %750, %v613
        %v752 = vpop.permute.xlu0 %751
        %755 = vset.pattern.permute.xlu0 0
        %756 = vperm.xlu0 %755, %v614
        %v757 = vpop.permute.xlu0 %756
        %760 = vset.pattern.permute.xlu0 0
        %761 = vperm.xlu0 %760, %v615
        %v762 = vpop.permute.xlu0 %761
        %765 = vset.pattern.permute.xlu0 0
        %766 = vperm.xlu0 %765, %v616
        %v767 = vpop.permute.xlu0 %766
        %770 = vset.pattern.permute.xlu0 0
        %771 = vperm.xlu0 %770, %v617
        %v772 = vpop.permute.xlu0 %771
        %775 = vset.pattern.permute.xlu0 0
        %776 = vperm.xlu0 %775, %v618
        %v777 = vpop.permute.xlu0 %776
        %780 = vset.pattern.permute.xlu0 0
        %781 = vperm.xlu0 %780, %v619
        %v782 = vpop.permute.xlu0 %781
        %785 = vset.pattern.permute.xlu0 0
        %786 = vperm.xlu0 %785, %v620
        %v787 = vpop.permute.xlu0 %786
        %790 = vset.pattern.permute.xlu0 0
        %791 = vperm.xlu0 %790, %v621
        %v792 = vpop.permute.xlu0 %791
        %795 = vset.pattern.permute.xlu0 0
        %796 = vperm.xlu0 %795, %v622
        %v797 = vpop.permute.xlu0 %796
        %800 = vset.pattern.permute.xlu0 0
        %801 = vperm.xlu0 %800, %v623
        %v802 = vpop.permute.xlu0 %801
        %805 = vset.pattern.permute.xlu0 0
        %806 = vperm.xlu0 %805, %v624
        %v807 = vpop.permute.xlu0 %806
        %810 = vset.pattern.permute.xlu0 0
        %811 = vperm.xlu0 %810, %v625
        %v812 = vpop.permute.xlu0 %811
        %815 = vset.pattern.permute.xlu0 0
        %816 = vperm.xlu0 %815, %v626
        %v817 = vpop.permute.xlu0 %816
        %820 = vset.pattern.permute.xlu0 0
        %821 = vperm.xlu0 %820, %v627
        %v822 = vpop.permute.xlu0 %821
        %825 = vset.pattern.permute.xlu0 0
        %826 = vperm.xlu0 %825, %v628
        %v827 = vpop.permute.xlu0 %826
        %830 = vset.pattern.permute.xlu0 0
        %831 = vperm.xlu0 %830, %v629
        %v832 = vpop.permute.xlu0 %831
        %835 = vset.pattern.permute.xlu0 0
        %836 = vperm.xlu0 %835, %v630
        %v837 = vpop.permute.xlu0 %836
        %840 = vset.pattern.permute.xlu0 0
        %841 = vperm.xlu0 %840, %v631
        %v842 = vpop.permute.xlu0 %841
        %845 = vset.pattern.permute.xlu0 0
        %846 = vperm.xlu0 %845, %v632
        %v847 = vpop.permute.xlu0 %846
        %850 = vset.pattern.permute.xlu0 0
        %851 = vperm.xlu0 %850, %v633
        %v852 = vpop.permute.xlu0 %851
        %855 = vset.pattern.permute.xlu0 0
        %856 = vperm.xlu0 %855, %v634
        %v857 = vpop.permute.xlu0 %856
        %860 = vset.pattern.permute.xlu0 0
        %861 = vperm.xlu0 %860, %v635
        %v862 = vpop.permute.xlu0 %861
        %865 = vset.pattern.permute.xlu0 0
        %866 = vperm.xlu0 %865, %v636
        %v867 = vpop.permute.xlu0 %866
        %870 = vset.pattern.permute.xlu0 0
        %871 = vperm.xlu0 %870, %v637
        %v872 = vpop.permute.xlu0 %871
        %875 = vset.pattern.permute.xlu0 0
        %876 = vperm.xlu0 %875, %v638
        %v877 = vpop.permute.xlu0 %876
        %880 = vset.pattern.permute.xlu0 0
        %881 = vperm.xlu0 %880, %v639
        %v882 = vpop.permute.xlu0 %881
        %885 = vset.pattern.permute.xlu0 0
        %886 = vperm.xlu0 %885, %v640
        %v887 = vpop.permute.xlu0 %886
        %890 = vset.pattern.permute.xlu0 0
        %891 = vperm.xlu0 %890, %v641
        %v892 = vpop.permute.xlu0 %891
        %895 = vset.pattern.permute.xlu0 0
        %896 = vperm.xlu0 %895, %v642
        %v897 = vpop.permute.xlu0 %896
        %900 = vset.pattern.permute.xlu0 0
        %901 = vperm.xlu0 %900, %v643
        %v902 = vpop.permute.xlu0 %901
        %905 = vset.pattern.permute.xlu0 0
        %906 = vperm.xlu0 %905, %v644
        %v907 = vpop.permute.xlu0 %906
        %910 = vset.pattern.permute.xlu0 0
        %911 = vperm.xlu0 %910, %v645
        %v912 = vpop.permute.xlu0 %911
        %915 = vset.pattern.permute.xlu0 0
        %916 = vperm.xlu0 %915, %v646
        %v917 = vpop.permute.xlu0 %916
        %920 = vset.pattern.permute.xlu0 0
        %921 = vperm.xlu0 %920, %v647
        %v922 = vpop.permute.xlu0 %921
        %925 = vset.pattern.permute.xlu0 0
        %926 = vperm.xlu0 %925, %v648
        %v927 = vpop.permute.xlu0 %926
        %930 = vset.pattern.permute.xlu0 0
        %931 = vperm.xlu0 %930, %v649
        %v932 = vpop.permute.xlu0 %931
        %935 = vset.pattern.permute.xlu0 0
        %936 = vperm.xlu0 %935, %v650
        %v937 = vpop.permute.xlu0 %936
        %940 = vset.pattern.permute.xlu0 0
        %941 = vperm.xlu0 %940, %v651
        %v942 = vpop.permute.xlu0 %941
        %945 = vset.pattern.permute.xlu0 0
        %946 = vperm.xlu0 %945, %v652
        %v947 = vpop.permute.xlu0 %946
        %950 = vset.pattern.permute.xlu0 0
        %951 = vperm.xlu0 %950, %v653
        %v952 = vpop.permute.xlu0 %951
        %955 = vset.pattern.permute.xlu0 0
        %956 = vperm.xlu0 %955, %v654
        %v957 = vpop.permute.xlu0 %956
        %960 = vset.pattern.permute.xlu0 0
        %961 = vperm.xlu0 %960, %v655
        %v962 = vpop.permute.xlu0 %961
        %965 = vset.pattern.permute.xlu0 0
        %966 = vperm.xlu0 %965, %v656
        %v967 = vpop.permute.xlu0 %966
        %970 = vset.pattern.permute.xlu0 0
        %971 = vperm.xlu0 %970, %v657
        %v972 = vpop.permute.xlu0 %971
        %975 = vset.pattern.permute.xlu0 0
        %976 = vperm.xlu0 %975, %v658
        %v977 = vpop.permute.xlu0 %976
        %v980 = vperm.slane %v398, 0
        %v982 = vmul.f32 %v662, %v980
        %v983 = vmul.f32 %v667, %v980
        %v984 = vmul.f32 %v672, %v980
        %v985 = vmul.f32 %v677, %v980
        %v986 = vmul.f32 %v682, %v980
        %v987 = vmul.f32 %v687, %v980
        %v988 = vmul.f32 %v692, %v980
        %v989 = vmul.f32 %v697, %v980
        %v990 = vmul.f32 %v702, %v980
        %v991 = vmul.f32 %v707, %v980
        %v992 = vmul.f32 %v712, %v980
        %v993 = vmul.f32 %v717, %v980
        %v994 = vmul.f32 %v722, %v980
        %v995 = vmul.f32 %v727, %v980
        %v996 = vmul.f32 %v732, %v980
        %v997 = vmul.f32 %v737, %v980
        %v998 = vmul.f32 %v742, %v980
        %v999 = vmul.f32 %v747, %v980
        %v1000 = vmul.f32 %v752, %v980
        %v1001 = vmul.f32 %v757, %v980
        %v1002 = vmul.f32 %v762, %v980
        %v1003 = vmul.f32 %v767, %v980
        %v1004 = vmul.f32 %v772, %v980
        %v1005 = vmul.f32 %v777, %v980
        %v1006 = vmul.f32 %v782, %v980
        %v1007 = vmul.f32 %v787, %v980
        %v1008 = vmul.f32 %v792, %v980
        %v1009 = vmul.f32 %v797, %v980
        %v1010 = vmul.f32 %v802, %v980
        %v1011 = vmul.f32 %v807, %v980
        %v1012 = vmul.f32 %v812, %v980
        %v1013 = vmul.f32 %v817, %v980
        %v1014 = vmul.f32 %v822, %v980
        %v1015 = vmul.f32 %v827, %v980
        %v1016 = vmul.f32 %v832, %v980
        %v1017 = vmul.f32 %v837, %v980
        %v1018 = vmul.f32 %v842, %v980
        %v1019 = vmul.f32 %v847, %v980
        %v1020 = vmul.f32 %v852, %v980
        %v1021 = vmul.f32 %v857, %v980
        %v1022 = vmul.f32 %v862, %v980
        %v1023 = vmul.f32 %v867, %v980
        %v1024 = vmul.f32 %v872, %v980
        %v1025 = vmul.f32 %v877, %v980
        %v1026 = vmul.f32 %v882, %v980
        %v1027 = vmul.f32 %v887, %v980
        %v1028 = vmul.f32 %v892, %v980
        %v1029 = vmul.f32 %v897, %v980
        %v1030 = vmul.f32 %v902, %v980
        %v1031 = vmul.f32 %v907, %v980
        %v1032 = vmul.f32 %v912, %v980
        %v1033 = vmul.f32 %v917, %v980
        %v1034 = vmul.f32 %v922, %v980
        %v1035 = vmul.f32 %v927, %v980
        %v1036 = vmul.f32 %v932, %v980
        %v1037 = vmul.f32 %v937, %v980
        %v1038 = vmul.f32 %v942, %v980
        %v1039 = vmul.f32 %v947, %v980
        %v1040 = vmul.f32 %v952, %v980
        %v1041 = vmul.f32 %v957, %v980
        %v1042 = vmul.f32 %v962, %v980
        %v1043 = vmul.f32 %v967, %v980
        %v1044 = vmul.f32 %v972, %v980
        %v1045 = vmul.f32 %v977, %v980
        %1047 = vset.pattern.permute.xlu0 0
        %1048 = vperm.xlu0 %1047, %v270
        %v1049 = vpop.permute.xlu0 %1048
        %1052 = vset.pattern.permute.xlu0 0
        %1053 = vperm.xlu0 %1052, %v271
        %v1054 = vpop.permute.xlu0 %1053
        %1057 = vset.pattern.permute.xlu0 0
        %1058 = vperm.xlu0 %1057, %v272
        %v1059 = vpop.permute.xlu0 %1058
        %1062 = vset.pattern.permute.xlu0 0
        %1063 = vperm.xlu0 %1062, %v273
        %v1064 = vpop.permute.xlu0 %1063
        %1067 = vset.pattern.permute.xlu0 0
        %1068 = vperm.xlu0 %1067, %v274
        %v1069 = vpop.permute.xlu0 %1068
        %1072 = vset.pattern.permute.xlu0 0
        %1073 = vperm.xlu0 %1072, %v275
        %v1074 = vpop.permute.xlu0 %1073
        %1077 = vset.pattern.permute.xlu0 0
        %1078 = vperm.xlu0 %1077, %v276
        %v1079 = vpop.permute.xlu0 %1078
        %1082 = vset.pattern.permute.xlu0 0
        %1083 = vperm.xlu0 %1082, %v277
        %v1084 = vpop.permute.xlu0 %1083
        %1087 = vset.pattern.permute.xlu0 0
        %1088 = vperm.xlu0 %1087, %v278
        %v1089 = vpop.permute.xlu0 %1088
        %1092 = vset.pattern.permute.xlu0 0
        %1093 = vperm.xlu0 %1092, %v279
        %v1094 = vpop.permute.xlu0 %1093
        %1097 = vset.pattern.permute.xlu0 0
        %1098 = vperm.xlu0 %1097, %v280
        %v1099 = vpop.permute.xlu0 %1098
        %1102 = vset.pattern.permute.xlu0 0
        %1103 = vperm.xlu0 %1102, %v281
        %v1104 = vpop.permute.xlu0 %1103
        %1107 = vset.pattern.permute.xlu0 0
        %1108 = vperm.xlu0 %1107, %v282
        %v1109 = vpop.permute.xlu0 %1108
        %1112 = vset.pattern.permute.xlu0 0
        %1113 = vperm.xlu0 %1112, %v283
        %v1114 = vpop.permute.xlu0 %1113
        %1117 = vset.pattern.permute.xlu0 0
        %1118 = vperm.xlu0 %1117, %v284
        %v1119 = vpop.permute.xlu0 %1118
        %1122 = vset.pattern.permute.xlu0 0
        %1123 = vperm.xlu0 %1122, %v285
        %v1124 = vpop.permute.xlu0 %1123
        %1127 = vset.pattern.permute.xlu0 0
        %1128 = vperm.xlu0 %1127, %v286
        %v1129 = vpop.permute.xlu0 %1128
        %1132 = vset.pattern.permute.xlu0 0
        %1133 = vperm.xlu0 %1132, %v287
        %v1134 = vpop.permute.xlu0 %1133
        %1137 = vset.pattern.permute.xlu0 0
        %1138 = vperm.xlu0 %1137, %v288
        %v1139 = vpop.permute.xlu0 %1138
        %1142 = vset.pattern.permute.xlu0 0
        %1143 = vperm.xlu0 %1142, %v289
        %v1144 = vpop.permute.xlu0 %1143
        %1147 = vset.pattern.permute.xlu0 0
        %1148 = vperm.xlu0 %1147, %v290
        %v1149 = vpop.permute.xlu0 %1148
        %1152 = vset.pattern.permute.xlu0 0
        %1153 = vperm.xlu0 %1152, %v291
        %v1154 = vpop.permute.xlu0 %1153
        %1157 = vset.pattern.permute.xlu0 0
        %1158 = vperm.xlu0 %1157, %v292
        %v1159 = vpop.permute.xlu0 %1158
        %1162 = vset.pattern.permute.xlu0 0
        %1163 = vperm.xlu0 %1162, %v293
        %v1164 = vpop.permute.xlu0 %1163
        %1167 = vset.pattern.permute.xlu0 0
        %1168 = vperm.xlu0 %1167, %v294
        %v1169 = vpop.permute.xlu0 %1168
        %1172 = vset.pattern.permute.xlu0 0
        %1173 = vperm.xlu0 %1172, %v295
        %v1174 = vpop.permute.xlu0 %1173
        %1177 = vset.pattern.permute.xlu0 0
        %1178 = vperm.xlu0 %1177, %v296
        %v1179 = vpop.permute.xlu0 %1178
        %1182 = vset.pattern.permute.xlu0 0
        %1183 = vperm.xlu0 %1182, %v297
        %v1184 = vpop.permute.xlu0 %1183
        %1187 = vset.pattern.permute.xlu0 0
        %1188 = vperm.xlu0 %1187, %v298
        %v1189 = vpop.permute.xlu0 %1188
        %1192 = vset.pattern.permute.xlu0 0
        %1193 = vperm.xlu0 %1192, %v299
        %v1194 = vpop.permute.xlu0 %1193
        %1197 = vset.pattern.permute.xlu0 0
        %1198 = vperm.xlu0 %1197, %v300
        %v1199 = vpop.permute.xlu0 %1198
        %1202 = vset.pattern.permute.xlu0 0
        %1203 = vperm.xlu0 %1202, %v301
        %v1204 = vpop.permute.xlu0 %1203
        %1207 = vset.pattern.permute.xlu0 0
        %1208 = vperm.xlu0 %1207, %v302
        %v1209 = vpop.permute.xlu0 %1208
        %1212 = vset.pattern.permute.xlu0 0
        %1213 = vperm.xlu0 %1212, %v303
        %v1214 = vpop.permute.xlu0 %1213
        %1217 = vset.pattern.permute.xlu0 0
        %1218 = vperm.xlu0 %1217, %v304
        %v1219 = vpop.permute.xlu0 %1218
        %1222 = vset.pattern.permute.xlu0 0
        %1223 = vperm.xlu0 %1222, %v305
        %v1224 = vpop.permute.xlu0 %1223
        %1227 = vset.pattern.permute.xlu0 0
        %1228 = vperm.xlu0 %1227, %v306
        %v1229 = vpop.permute.xlu0 %1228
        %1232 = vset.pattern.permute.xlu0 0
        %1233 = vperm.xlu0 %1232, %v307
        %v1234 = vpop.permute.xlu0 %1233
        %1237 = vset.pattern.permute.xlu0 0
        %1238 = vperm.xlu0 %1237, %v308
        %v1239 = vpop.permute.xlu0 %1238
        %1242 = vset.pattern.permute.xlu0 0
        %1243 = vperm.xlu0 %1242, %v309
        %v1244 = vpop.permute.xlu0 %1243
        %1247 = vset.pattern.permute.xlu0 0
        %1248 = vperm.xlu0 %1247, %v310
        %v1249 = vpop.permute.xlu0 %1248
        %1252 = vset.pattern.permute.xlu0 0
        %1253 = vperm.xlu0 %1252, %v311
        %v1254 = vpop.permute.xlu0 %1253
        %1257 = vset.pattern.permute.xlu0 0
        %1258 = vperm.xlu0 %1257, %v312
        %v1259 = vpop.permute.xlu0 %1258
        %1262 = vset.pattern.permute.xlu0 0
        %1263 = vperm.xlu0 %1262, %v313
        %v1264 = vpop.permute.xlu0 %1263
        %1267 = vset.pattern.permute.xlu0 0
        %1268 = vperm.xlu0 %1267, %v314
        %v1269 = vpop.permute.xlu0 %1268
        %1272 = vset.pattern.permute.xlu0 0
        %1273 = vperm.xlu0 %1272, %v315
        %v1274 = vpop.permute.xlu0 %1273
        %1277 = vset.pattern.permute.xlu0 0
        %1278 = vperm.xlu0 %1277, %v316
        %v1279 = vpop.permute.xlu0 %1278
        %1282 = vset.pattern.permute.xlu0 0
        %1283 = vperm.xlu0 %1282, %v317
        %v1284 = vpop.permute.xlu0 %1283
        %1287 = vset.pattern.permute.xlu0 0
        %1288 = vperm.xlu0 %1287, %v318
        %v1289 = vpop.permute.xlu0 %1288
        %1292 = vset.pattern.permute.xlu0 0
        %1293 = vperm.xlu0 %1292, %v319
        %v1294 = vpop.permute.xlu0 %1293
        %1297 = vset.pattern.permute.xlu0 0
        %1298 = vperm.xlu0 %1297, %v320
        %v1299 = vpop.permute.xlu0 %1298
        %1302 = vset.pattern.permute.xlu0 0
        %1303 = vperm.xlu0 %1302, %v321
        %v1304 = vpop.permute.xlu0 %1303
        %1307 = vset.pattern.permute.xlu0 0
        %1308 = vperm.xlu0 %1307, %v322
        %v1309 = vpop.permute.xlu0 %1308
        %1312 = vset.pattern.permute.xlu0 0
        %1313 = vperm.xlu0 %1312, %v323
        %v1314 = vpop.permute.xlu0 %1313
        %1317 = vset.pattern.permute.xlu0 0
        %1318 = vperm.xlu0 %1317, %v324
        %v1319 = vpop.permute.xlu0 %1318
        %1322 = vset.pattern.permute.xlu0 0
        %1323 = vperm.xlu0 %1322, %v325
        %v1324 = vpop.permute.xlu0 %1323
        %1327 = vset.pattern.permute.xlu0 0
        %1328 = vperm.xlu0 %1327, %v326
        %v1329 = vpop.permute.xlu0 %1328
        %1332 = vset.pattern.permute.xlu0 0
        %1333 = vperm.xlu0 %1332, %v327
        %v1334 = vpop.permute.xlu0 %1333
        %1337 = vset.pattern.permute.xlu0 0
        %1338 = vperm.xlu0 %1337, %v328
        %v1339 = vpop.permute.xlu0 %1338
        %1342 = vset.pattern.permute.xlu0 0
        %1343 = vperm.xlu0 %1342, %v329
        %v1344 = vpop.permute.xlu0 %1343
        %1347 = vset.pattern.permute.xlu0 0
        %1348 = vperm.xlu0 %1347, %v330
        %v1349 = vpop.permute.xlu0 %1348
        %1352 = vset.pattern.permute.xlu0 0
        %1353 = vperm.xlu0 %1352, %v331
        %v1354 = vpop.permute.xlu0 %1353
        %1357 = vset.pattern.permute.xlu0 0
        %1358 = vperm.xlu0 %1357, %v332
        %v1359 = vpop.permute.xlu0 %1358
        %1362 = vset.pattern.permute.xlu0 0
        %1363 = vperm.xlu0 %1362, %v333
        %v1364 = vpop.permute.xlu0 %1363
        %v1366 = vadd.f32 %v1049, %v982
        %v1367 = vadd.f32 %v1054, %v983
        %v1368 = vadd.f32 %v1059, %v984
        %v1369 = vadd.f32 %v1064, %v985
        %v1370 = vadd.f32 %v1069, %v986
        %v1371 = vadd.f32 %v1074, %v987
        %v1372 = vadd.f32 %v1079, %v988
        %v1373 = vadd.f32 %v1084, %v989
        %v1374 = vadd.f32 %v1089, %v990
        %v1375 = vadd.f32 %v1094, %v991
        %v1376 = vadd.f32 %v1099, %v992
        %v1377 = vadd.f32 %v1104, %v993
        %v1378 = vadd.f32 %v1109, %v994
        %v1379 = vadd.f32 %v1114, %v995
        %v1380 = vadd.f32 %v1119, %v996
        %v1381 = vadd.f32 %v1124, %v997
        %v1382 = vadd.f32 %v1129, %v998
        %v1383 = vadd.f32 %v1134, %v999
        %v1384 = vadd.f32 %v1139, %v1000
        %v1385 = vadd.f32 %v1144, %v1001
        %v1386 = vadd.f32 %v1149, %v1002
        %v1387 = vadd.f32 %v1154, %v1003
        %v1388 = vadd.f32 %v1159, %v1004
        %v1389 = vadd.f32 %v1164, %v1005
        %v1390 = vadd.f32 %v1169, %v1006
        %v1391 = vadd.f32 %v1174, %v1007
        %v1392 = vadd.f32 %v1179, %v1008
        %v1393 = vadd.f32 %v1184, %v1009
        %v1394 = vadd.f32 %v1189, %v1010
        %v1395 = vadd.f32 %v1194, %v1011
        %v1396 = vadd.f32 %v1199, %v1012
        %v1397 = vadd.f32 %v1204, %v1013
        %v1398 = vadd.f32 %v1209, %v1014
        %v1399 = vadd.f32 %v1214, %v1015
        %v1400 = vadd.f32 %v1219, %v1016
        %v1401 = vadd.f32 %v1224, %v1017
        %v1402 = vadd.f32 %v1229, %v1018
        %v1403 = vadd.f32 %v1234, %v1019
        %v1404 = vadd.f32 %v1239, %v1020
        %v1405 = vadd.f32 %v1244, %v1021
        %v1406 = vadd.f32 %v1249, %v1022
        %v1407 = vadd.f32 %v1254, %v1023
        %v1408 = vadd.f32 %v1259, %v1024
        %v1409 = vadd.f32 %v1264, %v1025
        %v1410 = vadd.f32 %v1269, %v1026
        %v1411 = vadd.f32 %v1274, %v1027
        %v1412 = vadd.f32 %v1279, %v1028
        %v1413 = vadd.f32 %v1284, %v1029
        %v1414 = vadd.f32 %v1289, %v1030
        %v1415 = vadd.f32 %v1294, %v1031
        %v1416 = vadd.f32 %v1299, %v1032
        %v1417 = vadd.f32 %v1304, %v1033
        %v1418 = vadd.f32 %v1309, %v1034
        %v1419 = vadd.f32 %v1314, %v1035
        %v1420 = vadd.f32 %v1319, %v1036
        %v1421 = vadd.f32 %v1324, %v1037
        %v1422 = vadd.f32 %v1329, %v1038
        %v1423 = vadd.f32 %v1334, %v1039
        %v1424 = vadd.f32 %v1339, %v1040
        %v1425 = vadd.f32 %v1344, %v1041
        %v1426 = vadd.f32 %v1349, %v1042
        %v1427 = vadd.f32 %v1354, %v1043
        %v1428 = vadd.f32 %v1359, %v1044
        %v1429 = vadd.f32 %v1364, %v1045
        %v1430 = vmul.f32 %v1366, %v334
        %v1431 = vmul.f32 %v1367, %v335
        %v1432 = vmul.f32 %v1368, %v336
        %v1433 = vmul.f32 %v1369, %v337
        %v1434 = vmul.f32 %v1370, %v338
        %v1435 = vmul.f32 %v1371, %v339
        %v1436 = vmul.f32 %v1372, %v340
        %v1437 = vmul.f32 %v1373, %v341
        %v1438 = vmul.f32 %v1374, %v342
        %v1439 = vmul.f32 %v1375, %v343
        %v1440 = vmul.f32 %v1376, %v344
        %v1441 = vmul.f32 %v1377, %v345
        %v1442 = vmul.f32 %v1378, %v346
        %v1443 = vmul.f32 %v1379, %v347
        %v1444 = vmul.f32 %v1380, %v348
        %v1445 = vmul.f32 %v1381, %v349
        %v1446 = vmul.f32 %v1382, %v350
        %v1447 = vmul.f32 %v1383, %v351
        %v1448 = vmul.f32 %v1384, %v352
        %v1449 = vmul.f32 %v1385, %v353
        %v1450 = vmul.f32 %v1386, %v354
        %v1451 = vmul.f32 %v1387, %v355
        %v1452 = vmul.f32 %v1388, %v356
        %v1453 = vmul.f32 %v1389, %v357
        %v1454 = vmul.f32 %v1390, %v358
        %v1455 = vmul.f32 %v1391, %v359
        %v1456 = vmul.f32 %v1392, %v360
        %v1457 = vmul.f32 %v1393, %v361
        %v1458 = vmul.f32 %v1394, %v362
        %v1459 = vmul.f32 %v1395, %v363
        %v1460 = vmul.f32 %v1396, %v364
        %v1461 = vmul.f32 %v1397, %v365
        %v1462 = vmul.f32 %v1398, %v366
        %v1463 = vmul.f32 %v1399, %v367
        %v1464 = vmul.f32 %v1400, %v368
        %v1465 = vmul.f32 %v1401, %v369
        %v1466 = vmul.f32 %v1402, %v370
        %v1467 = vmul.f32 %v1403, %v371
        %v1468 = vmul.f32 %v1404, %v372
        %v1469 = vmul.f32 %v1405, %v373
        %v1470 = vmul.f32 %v1406, %v374
        %v1471 = vmul.f32 %v1407, %v375
        %v1472 = vmul.f32 %v1408, %v376
        %v1473 = vmul.f32 %v1409, %v377
        %v1474 = vmul.f32 %v1410, %v378
        %v1475 = vmul.f32 %v1411, %v379
        %v1476 = vmul.f32 %v1412, %v380
        %v1477 = vmul.f32 %v1413, %v381
        %v1478 = vmul.f32 %v1414, %v382
        %v1479 = vmul.f32 %v1415, %v383
        %v1480 = vmul.f32 %v1416, %v384
        %v1481 = vmul.f32 %v1417, %v385
        %v1482 = vmul.f32 %v1418, %v386
        %v1483 = vmul.f32 %v1419, %v387
        %v1484 = vmul.f32 %v1420, %v388
        %v1485 = vmul.f32 %v1421, %v389
        %v1486 = vmul.f32 %v1422, %v390
        %v1487 = vmul.f32 %v1423, %v391
        %v1488 = vmul.f32 %v1424, %v392
        %v1489 = vmul.f32 %v1425, %v393
        %v1490 = vmul.f32 %v1426, %v394
        %v1491 = vmul.f32 %v1427, %v395
        %v1492 = vmul.f32 %v1428, %v396
        %v1493 = vmul.f32 %v1429, %v397
        %1494 = vst [vmem:[%s261] sm:$0xff] %v1430
        %1495 = vst [vmem:[%s261 + $0x8] sm:$0xff] %v1431
        %1496 = vst [vmem:[%s261 + $0x10] sm:$0xff] %v1432
        %1497 = vst [vmem:[%s261 + $0x18] sm:$0xff] %v1433
        %1498 = vst [vmem:[%s261 + $0x20] sm:$0xff] %v1434
        %1499 = vst [vmem:[%s261 + $0x28] sm:$0xff] %v1435
        %1500 = vst [vmem:[%s261 + $0x30] sm:$0xff] %v1436
        %1501 = vst [vmem:[%s261 + $0x38] sm:$0xff] %v1437
        %1502 = vst [vmem:[%s261 + $0x40] sm:$0xff] %v1438
        %1503 = vst [vmem:[%s261 + $0x48] sm:$0xff] %v1439
        %1504 = vst [vmem:[%s261 + $0x50] sm:$0xff] %v1440
        %1505 = vst [vmem:[%s261 + $0x58] sm:$0xff] %v1441
        %1506 = vst [vmem:[%s261 + $0x60] sm:$0xff] %v1442
        %1507 = vst [vmem:[%s261 + $0x68] sm:$0xff] %v1443
        %1508 = vst [vmem:[%s261 + $0x70] sm:$0xff] %v1444
        %1509 = vst [vmem:[%s261 + $0x78] sm:$0xff] %v1445
        %1510 = vst [vmem:[%s261 + $0x80] sm:$0xff] %v1446
        %1511 = vst [vmem:[%s261 + $0x88] sm:$0xff] %v1447
        %1512 = vst [vmem:[%s261 + $0x90] sm:$0xff] %v1448
        %1513 = vst [vmem:[%s261 + $0x98] sm:$0xff] %v1449
        %1514 = vst [vmem:[%s261 + $0xa0] sm:$0xff] %v1450
        %1515 = vst [vmem:[%s261 + $0xa8] sm:$0xff] %v1451
        %1516 = vst [vmem:[%s261 + $0xb0] sm:$0xff] %v1452
        %1517 = vst [vmem:[%s261 + $0xb8] sm:$0xff] %v1453
        %1518 = vst [vmem:[%s261 + $0xc0] sm:$0xff] %v1454
        %1519 = vst [vmem:[%s261 + $0xc8] sm:$0xff] %v1455
        %1520 = vst [vmem:[%s261 + $0xd0] sm:$0xff] %v1456
        %1521 = vst [vmem:[%s261 + $0xd8] sm:$0xff] %v1457
        %1522 = vst [vmem:[%s261 + $0xe0] sm:$0xff] %v1458
        %1523 = vst [vmem:[%s261 + $0xe8] sm:$0xff] %v1459
        %1524 = vst [vmem:[%s261 + $0xf0] sm:$0xff] %v1460
        %1525 = vst [vmem:[%s261 + $0xf8] sm:$0xff] %v1461
        %1526 = vst [vmem:[%s261 + $0x100] sm:$0xff] %v1462
        %1527 = vst [vmem:[%s261 + $0x108] sm:$0xff] %v1463
        %1528 = vst [vmem:[%s261 + $0x110] sm:$0xff] %v1464
        %1529 = vst [vmem:[%s261 + $0x118] sm:$0xff] %v1465
        %1530 = vst [vmem:[%s261 + $0x120] sm:$0xff] %v1466
        %1531 = vst [vmem:[%s261 + $0x128] sm:$0xff] %v1467
        %1532 = vst [vmem:[%s261 + $0x130] sm:$0xff] %v1468
        %1533 = vst [vmem:[%s261 + $0x138] sm:$0xff] %v1469
        %1534 = vst [vmem:[%s261 + $0x140] sm:$0xff] %v1470
        %1535 = vst [vmem:[%s261 + $0x148] sm:$0xff] %v1471
        %1536 = vst [vmem:[%s261 + $0x150] sm:$0xff] %v1472
        %1537 = vst [vmem:[%s261 + $0x158] sm:$0xff] %v1473
        %1538 = vst [vmem:[%s261 + $0x160] sm:$0xff] %v1474
        %1539 = vst [vmem:[%s261 + $0x168] sm:$0xff] %v1475
        %1540 = vst [vmem:[%s261 + $0x170] sm:$0xff] %v1476
        %1541 = vst [vmem:[%s261 + $0x178] sm:$0xff] %v1477
        %1542 = vst [vmem:[%s261 + $0x180] sm:$0xff] %v1478
        %1543 = vst [vmem:[%s261 + $0x188] sm:$0xff] %v1479
        %1544 = vst [vmem:[%s261 + $0x190] sm:$0xff] %v1480
        %1545 = vst [vmem:[%s261 + $0x198] sm:$0xff] %v1481
        %1546 = vst [vmem:[%s261 + $0x1a0] sm:$0xff] %v1482
        %1547 = vst [vmem:[%s261 + $0x1a8] sm:$0xff] %v1483
        %1548 = vst [vmem:[%s261 + $0x1b0] sm:$0xff] %v1484
        %1549 = vst [vmem:[%s261 + $0x1b8] sm:$0xff] %v1485
        %1550 = vst [vmem:[%s261 + $0x1c0] sm:$0xff] %v1486
        %1551 = vst [vmem:[%s261 + $0x1c8] sm:$0xff] %v1487
        %1552 = vst [vmem:[%s261 + $0x1d0] sm:$0xff] %v1488
        %1553 = vst [vmem:[%s261 + $0x1d8] sm:$0xff] %v1489
        %1554 = vst [vmem:[%s261 + $0x1e0] sm:$0xff] %v1490
        %1555 = vst [vmem:[%s261 + $0x1e8] sm:$0xff] %v1491
        %1556 = vst [vmem:[%s261 + $0x1f0] sm:$0xff] %v1492
        %1557 = vst [vmem:[%s261 + $0x1f8] sm:$0xff] %v1493
        %s1558 = sand.u32 %s145, 1
        %s1559 = scalar_lea.sflag [#allocation5], %s1558
        %s1560 = sand.u32 %s145, 1
        %s1561 = smul.addr %s1560, 512
        %s1562 = scalar_lea.vmem [#allocation6], %s1561
        // Predicated region
        $region41: #{tpu_custom_call.1} parent=35 // pred_check
          %p1563 = pneg %p155
        $region42: #{tpu_custom_call.1} parent=35 // pred_check_branch
          %1565 = sbr.rel (%p1563) target = $region44
        $region43: #{tpu_custom_call.1} parent=35 // pred_region
          %1567 = vsyncadd %s1559, 0
          %s1568 = smul.addr %s26, 128
          %s1569 = sadd.s32 %s27, %s1568
          %s1570 = smul.addr %s1569, 8
          %s1571 = scalar_lea.hbm %s4, %s1570
          %s1572 = sshll.u32 %s1562, 4
          %s1573 = int_to_ptr.vmem [resolvable:$true] %s1572
          %s1574 = sshll.u32 %s1571, 4
          %s1575 = int_to_ptr.hbm [resolvable:$true] %s1574
          %1580 = dma.vmem_to_hbm [thread:$0]  %s1573, 8192, %s1575, %s1559, 128, 256, 8
        $region44: #{tpu_custom_call.1} parent=35 // pred_fallthru
          _
      $region36: #{tpu_custom_call.1} parent=5 // pred_fallthru
        _
      %p1581 = scmp.le.s32.totalorder 2, %s17
      // Predicated region
      $region45: #{tpu_custom_call.1} parent=5 // pred_check
        %p1582 = pneg %p1581
      $region46: #{tpu_custom_call.1} parent=5 // pred_check_branch
        %1584 = sbr.rel (%p1582) target = $region48
      $region47: #{tpu_custom_call.1} parent=5 // pred_region
        %s1585 = ssub.s32 %s17, 2
        // Predicated region
        $region49: #{tpu_custom_call.1} parent=47 // pred_check
          %p1586 = pneg %p161
        $region50: #{tpu_custom_call.1} parent=47 // pred_check_branch
          %1588 = sbr.rel (%p1586) target = $region52
        $region51: #{tpu_custom_call.1} parent=47 // pred_region
          %s1589 = sand.u32 %s146, 1
          %s1590 = scalar_lea.sflag [#allocation5], %s1589
          %s1591 = sand.u32 %s146, 1
          %s1592 = smul.addr %s1591, 512
          %s1593 = scalar_lea.vmem [#allocation6], %s1592
          %1595 = dma.done %s1590, 8192
        $region52: #{tpu_custom_call.1} parent=47 // pred_fallthru
          _
      $region48: #{tpu_custom_call.1} parent=5 // pred_fallthru
        _
    $region6: #{tpu_custom_call.1} parent=1 // loop_footer
      %s21 = sadd.s32 1, %s17
    $region7: #{tpu_custom_call.1} parent=1 // loop_footer_branch
      %16 = sbr.rel target = $region3
    $region8: #{tpu_custom_call.1} parent=1 // loop_exit
      _
    %1596 = vsyncpa [#allocation4], 1
    %s1597 = scalar_lea.sflag [#allocation4], 1
    %1598 = vsyncpa %s1597, 1
    %1599 = vsyncpa [#allocation5], 1
    %s1600 = scalar_lea.sflag [#allocation5], 1
    %1601 = vsyncpa %s1600, 1

</llo_original>
